<compile_context>
chip_gen: v6e
topology: v6e:2x2x1
jax: 0.10.0
libtpu: 0.0.40
codegen_flags: <defaults>
</compile_context>

<pallas_src>
import functools

import jax
import jax.numpy as jnp
from jax import lax
from jax.experimental import pallas as pl
from jax.experimental.pallas import tpu as pltpu

EPS = 1e-5  # torch.nn.BatchNorm1d default


def _cdiv(a, b):
    return -(-a // b)


def _vmem_limits():
    """(vmem_limit_bytes, per-step working-set budget), sized per generation."""
    cap = None
    try:
        cap = getattr(pltpu.get_tpu_info(), "vmem_capacity_bytes", None)
    except Exception:
        cap = None
    if not cap:
        cap = 64 * 1024 * 1024                         # v7x-safe fallback
    limit = min((cap * 3) // 4, 96 * 1024 * 1024)      # 96 MiB v5e/v6e, 48 MiB v7x
    budget = int(limit * 0.55)
    return int(limit), budget


def _choose_tile_l(l_out, c_in, c_out, K, stride, dilation, budget):
    """Largest L-tile fitting the double-buffered working set; multiple of 128
    (lane-dense output stores) unless a single tile covers all of L_out."""
    resident = 2 * (K * c_out * c_in * 2) + 16 * c_out * 4   # weights (2 bufs) + stats
    avail = max(budget - resident, 1 << 20)
    halo = 0 if stride > 1 else (K - 1) * dilation
    x_per_col = c_in * (K if stride > 1 else 1) * 2          # bf16 X tile bytes / column
    per_col = 2 * x_per_col + 3 * c_out * 4                  # 2x X buf + 2x out buf + f32 acc
    cap = (avail - 2 * c_in * halo * 2) // max(per_col, 1)
    cap = max(128, (cap // 128) * 128)
    cap = min(cap, 8192)
    if l_out <= cap:
        return l_out, 1           # single tile: no L padding, no final slice
    return cap, _cdiv(l_out, cap)


# ------------------------------- kernels ----------------------------------- #

def _make_kernels(K, step, tl):
    """K, step (tap offset inside the gathered tile) and tl are trace-time
    constants; both kernels share the same K-shifted-matmul conv."""

    def _conv(x_ref, w_ref):
        y = None
        for k in range(K):                                    # K is small & static
            xs = x_ref[0, 0, :, k * step:k * step + tl]       # (C_in, tl) bf16
            yk = jnp.dot(w_ref[k], xs, preferred_element_type=jnp.float32)
            y = yk if y is None else y + yk
        return y                                              # (C_out, tl) f32

    def conv_stats_kernel(x_ref, w_ref, sum_ref, ssq_ref):
        i = pl.program_id(1)
        y = _conv(x_ref, w_ref)

        @pl.when(i == 0)
        def _():
            sum_ref[...] = jnp.zeros_like(sum_ref)
            ssq_ref[...] = jnp.zeros_like(ssq_ref)

        sum_ref[...] += jnp.sum(y, axis=1, keepdims=True)[None]
        ssq_ref[...] += jnp.sum(y * y, axis=1, keepdims=True)[None]

    def conv_bn_relu_kernel(x_ref, w_ref, a_ref, b_ref, o_ref):
        y = _conv(x_ref, w_ref)
        out = jnp.maximum(y * a_ref[...] + b_ref[...], 0.0)
        o_ref[...] = out[None].astype(o_ref.dtype)

    return conv_stats_kernel, conv_bn_relu_kernel


# ------------------------------- wrapper ------------------------------------ #

@functools.partial(jax.jit, static_argnames=("kernel_size", "stride",
                                              "padding", "dilation"))
def conv_bn_relu_1d(x, weight, bias, gamma, beta, *, kernel_size, stride=1,
                    padding=0, dilation=1):
    """x: (N, C_in, L); weight: (C_out, C_in, K). Returns (N, C_out, L_out)."""
    del bias  # exactly cancelled by BN mean-centering in the forward pass
    n, c_in, l = x.shape
    c_out = weight.shape[0]
    K = kernel_size
    l_out = (l + 2 * padding - dilation * (K - 1) - 1) // stride + 1
    m = n * l_out                                       # true BN reduction count

    vmem_limit, budget = _vmem_limits()
    tl, n_tiles = _choose_tile_l(l_out, c_in, c_out, K, stride, dilation, budget)
    l_pad = n_tiles * tl

    # Tap layout inside the per-tile buffer: stride==1 uses an overlapping halo
    # (no data duplication); stride>1 falls back to per-tap columns (K x).
    if stride == 1:
        step, span = dilation, tl + (K - 1) * dilation
    else:
        step, span = tl, K * tl

    # ---- bf16 channel-major tiles: (N, n_tiles, C_in, span) ----
    x_bf = x.astype(jnp.bfloat16)                        # cast BEFORE pad/gather
    needed = (l_pad - 1) * stride + (K - 1) * dilation + 1
    pad_right = max(0, needed - padding - l)
    x_c = jnp.pad(x_bf, ((0, 0), (0, 0), (padding, pad_right)))
    t_ar = jnp.arange(n_tiles)
    if stride == 1:
        idx = t_ar[:, None] * tl + jnp.arange(span)[None, :]
    else:
        idx = ((t_ar[:, None, None] * tl + jnp.arange(tl)[None, None, :]) * stride
               + jnp.arange(K)[None, :, None] * dilation).reshape(n_tiles, span)
    x_tiles = jnp.transpose(jnp.take(x_c, idx, axis=2), (0, 2, 1, 3))

    w_t = jnp.transpose(weight, (2, 0, 1)).astype(jnp.bfloat16)   # (K, C_out, C_in)

    stats_kernel, apply_kernel = _make_kernels(K, step, tl)
    x_spec = pl.BlockSpec((1, 1, c_in, span), lambda b, i: (b, i, 0, 0))
    w_spec = pl.BlockSpec((K, c_out, c_in), lambda b, i: (0, 0, 0))   # resident
    flops = 2 * n * l_pad * K * c_in * c_out
    x_bytes = n * n_tiles * c_in * span * 2 + K * c_out * c_in * 2

    # ---- Pass 1: per-batch partial per-channel sum / sum-of-squares ----
    csum, cssq = pl.pallas_call(
        stats_kernel,
        out_shape=(jax.ShapeDtypeStruct((n, c_out, 1), jnp.float32),
                   jax.ShapeDtypeStruct((n, c_out, 1), jnp.float32)),
        grid=(n, n_tiles),
        in_specs=[x_spec, w_spec],
        out_specs=(pl.BlockSpec((1, c_out, 1), lambda b, i: (b, 0, 0)),
                   pl.BlockSpec((1, c_out, 1), lambda b, i: (b, 0, 0))),
        compiler_params=pltpu.CompilerParams(
            dimension_semantics=("parallel", "arbitrary"),
            vmem_limit_bytes=vmem_limit),
        cost_estimate=pl.CostEstimate(
            flops=flops + 4 * n * l_pad * c_out, transcendentals=0,
            bytes_accessed=x_bytes + 2 * n * c_out * 4),
    )(x_tiles, w_t)

    # ---- Tiny per-channel BN fold (biased batch variance, torch train mode) ----
    s = jnp.sum(csum, axis=0)                            # (C_out, 1)
    ss = jnp.sum(cssq, axis=0)
    mean = s / m
    var = jnp.maximum(ss / m - mean * mean, 0.0)
    a = gamma.astype(jnp.float32)[:, None] * lax.rsqrt(var + EPS)
    b = beta.astype(jnp.float32)[:, None] - mean * a

    # ---- Pass 2: recompute conv, fused BN-apply + ReLU, store NCL directly ----
    out = pl.pallas_call(
        apply_kernel,
        out_shape=jax.ShapeDtypeStruct((n, c_out, l_pad), jnp.float32),
        grid=(n, n_tiles),
        in_specs=[x_spec, w_spec,
                  pl.BlockSpec((c_out, 1), lambda b, i: (0, 0)),
                  pl.BlockSpec((c_out, 1), lambda b, i: (0, 0))],
        out_specs=pl.BlockSpec((1, c_out, tl), lambda b, i: (b, 0, i)),
        compiler_params=pltpu.CompilerParams(
            dimension_semantics=("parallel", "parallel"),
            vmem_limit_bytes=vmem_limit),
        cost_estimate=pl.CostEstimate(
            flops=flops + 3 * n * l_pad * c_out, transcendentals=0,
            bytes_accessed=x_bytes + n * c_out * l_pad * 4),
    )(x_tiles, w_t, a, b)

    return out if l_pad == l_out else out[:, :, :l_out]


# ------------------------------ reference ----------------------------------- #

def _reference(x, weight, bias, gamma, beta, *, stride, padding, dilation,
               matmul_dtype=jnp.float32):
    """Pure-JAX reference (conv1d + train-mode BN + ReLU)."""
    xw = x.astype(matmul_dtype).astype(jnp.float32)
    ww = weight.astype(matmul_dtype).astype(jnp.float32)
    y = lax.conv_general_dilated(
        xw, ww, window_strides=(stride,), padding=[(padding, padding)],
        rhs_dilation=(dilation,), dimension_numbers=("NCH", "OIH", "NCH"))
    y = y + bias[None, :, None]
    mean = jnp.mean(y, axis=(0, 2), keepdims=True)
    var = jnp.mean((y - mean) ** 2, axis=(0, 2), keepdims=True)
    y = (y - mean) / jnp.sqrt(var + EPS)
    y = y * gamma[None, :, None] + beta[None, :, None]
    return jnp.maximum(y, 0.0)


if __name__ == "__main__":
    # Small shapes consistent with Conv1d input (N, C_in, L).
    N, C_IN, C_OUT, L, K = 2, 4, 8, 16, 3
    STRIDE, PADDING, DILATION = 1, 1, 1
    L_OUT = (L + 2 * PADDING - DILATION * (K - 1) - 1) // STRIDE + 1

    key = jax.random.PRNGKey(0)
    kx, kw, kb, kg, kbeta = jax.random.split(key, 5)

    x = jax.random.normal(kx, (N, C_IN, L), dtype=jnp.float32)
    weight = jax.random.normal(kw, (C_OUT, C_IN, K), dtype=jnp.float32) * 0.1
    bias = jax.random.normal(kb, (C_OUT,), dtype=jnp.float32) * 0.1
    gamma = 1.0 + 0.1 * jax.random.normal(kg, (C_OUT,), dtype=jnp.float32)
    beta = 0.1 * jax.random.normal(kbeta, (C_OUT,), dtype=jnp.float32)

    out = conv_bn_relu_1d(x, weight, bias, gamma, beta,
                          kernel_size=K, stride=STRIDE, padding=PADDING,
                          dilation=DILATION)
    out = jax.block_until_ready(out)
    assert out.shape == (N, C_OUT, L_OUT)

    # Tight check against a reference that models the kernel's bf16 MXU
    # operand precision (validates kernel logic itself)...
    ref_bf16 = _reference(x, weight, bias, gamma, beta, stride=STRIDE,
                          padding=PADDING, dilation=DILATION,
                          matmul_dtype=jnp.bfloat16)
    assert jnp.allclose(out, ref_bf16, atol=2e-3, rtol=2e-3)

    # ...and a looser check against the full-f32 reference (overall fidelity).
    ref_f32 = _reference(x, weight, bias, gamma, beta, stride=STRIDE,
                         padding=PADDING, dilation=DILATION,
                         matmul_dtype=jnp.float32)
    assert jnp.allclose(out, ref_f32, atol=5e-2, rtol=5e-2)

    print("KERNEL_OK")
</pallas_src>

<mosaic_0001>
module attributes {stable_mosaic.version = 11 : i64} {
  func.func @conv_bn_relu_kernel(%arg0: i32, %arg1: i32, %arg2: memref<1x1x4x18xbf16, #tpu.memory_space<vmem>>, %arg3: memref<3x8x4xbf16, #tpu.memory_space<vmem>>, %arg4: memref<8x1xf32, #tpu.memory_space<vmem>>, %arg5: memref<8x1xf32, #tpu.memory_space<vmem>>, %arg6: memref<1x8x16xf32, #tpu.memory_space<vmem>>) attributes {dimension_semantics = [#tpu.dimension_semantics<parallel>, #tpu.dimension_semantics<parallel>], iteration_bounds = array<i64: 2, 1>, scalar_prefetch = 0 : i64, scratch_operands = 0 : i64, tpu.core_type = #tpu.core_type<tc>, window_params = [{transform_indices = @transform_0, window_bounds = array<i64: 1, 1, 4, 18>}, {pipeline_mode = #tpu.pipeline_mode<synchronous>, transform_indices = @transform_1, window_bounds = array<i64: 3, 8, 4>}, {pipeline_mode = #tpu.pipeline_mode<synchronous>, transform_indices = @transform_2, window_bounds = array<i64: 8, 1>}, {pipeline_mode = #tpu.pipeline_mode<synchronous>, transform_indices = @transform_3, window_bounds = array<i64: 8, 1>}, {transform_indices = @transform_4, window_bounds = array<i64: 1, 8, 16>}]} {
    %c0 = arith.constant 0 : index
    %c0_0 = arith.constant 0 : index
    %c0_1 = arith.constant 0 : index
    %c0_2 = arith.constant 0 : index
    %0 = vector.load %arg2[%c0, %c0_0, %c0_1, %c0_2] : memref<1x1x4x18xbf16, #tpu.memory_space<vmem>>, vector<1x1x4x16xbf16>
    %1 = vector.shape_cast %0 : vector<1x1x4x16xbf16> to vector<4x16xbf16>
    %c0_3 = arith.constant 0 : index
    %c0_4 = arith.constant 0 : index
    %c0_5 = arith.constant 0 : index
    %2 = vector.load %arg3[%c0_3, %c0_4, %c0_5] : memref<3x8x4xbf16, #tpu.memory_space<vmem>>, vector<1x8x4xbf16>
    %3 = vector.shape_cast %2 : vector<1x8x4xbf16> to vector<8x4xbf16>
    %cst = arith.constant dense<0.000000e+00> : vector<8x16xf32>
    %4 = tpu.matmul %3, %1, %cst {dimension_numbers = #tpu.dot_dimension_numbers<[1], [0], [0], [1], [0, 0, 1, 1], [], []>} : vector<8x4xbf16>, vector<4x16xbf16>, vector<8x16xf32> -> vector<8x16xf32>
    %c0_6 = arith.constant 0 : index
    %c0_7 = arith.constant 0 : index
    %c0_8 = arith.constant 0 : index
    %c1 = arith.constant 1 : index
    %5 = vector.load %arg2[%c0_6, %c0_7, %c0_8, %c1] : memref<1x1x4x18xbf16, #tpu.memory_space<vmem>>, vector<1x1x4x16xbf16>
    %6 = vector.shape_cast %5 : vector<1x1x4x16xbf16> to vector<4x16xbf16>
    %c1_9 = arith.constant 1 : index
    %c0_10 = arith.constant 0 : index
    %c0_11 = arith.constant 0 : index
    %7 = vector.load %arg3[%c1_9, %c0_10, %c0_11] : memref<3x8x4xbf16, #tpu.memory_space<vmem>>, vector<1x8x4xbf16>
    %8 = vector.shape_cast %7 : vector<1x8x4xbf16> to vector<8x4xbf16>
    %cst_12 = arith.constant dense<0.000000e+00> : vector<8x16xf32>
    %9 = tpu.matmul %8, %6, %cst_12 {dimension_numbers = #tpu.dot_dimension_numbers<[1], [0], [0], [1], [0, 0, 1, 1], [], []>} : vector<8x4xbf16>, vector<4x16xbf16>, vector<8x16xf32> -> vector<8x16xf32>
    %10 = arith.addf %4, %9 : vector<8x16xf32>
    %c0_13 = arith.constant 0 : index
    %c0_14 = arith.constant 0 : index
    %c0_15 = arith.constant 0 : index
    %c2 = arith.constant 2 : index
    %11 = vector.load %arg2[%c0_13, %c0_14, %c0_15, %c2] : memref<1x1x4x18xbf16, #tpu.memory_space<vmem>>, vector<1x1x4x16xbf16>
    %12 = vector.shape_cast %11 : vector<1x1x4x16xbf16> to vector<4x16xbf16>
    %c2_16 = arith.constant 2 : index
    %c0_17 = arith.constant 0 : index
    %c0_18 = arith.constant 0 : index
    %13 = vector.load %arg3[%c2_16, %c0_17, %c0_18] : memref<3x8x4xbf16, #tpu.memory_space<vmem>>, vector<1x8x4xbf16>
    %14 = vector.shape_cast %13 : vector<1x8x4xbf16> to vector<8x4xbf16>
    %cst_19 = arith.constant dense<0.000000e+00> : vector<8x16xf32>
    %15 = tpu.matmul %14, %12, %cst_19 {dimension_numbers = #tpu.dot_dimension_numbers<[1], [0], [0], [1], [0, 0, 1, 1], [], []>} : vector<8x4xbf16>, vector<4x16xbf16>, vector<8x16xf32> -> vector<8x16xf32>
    %16 = arith.addf %10, %15 : vector<8x16xf32>
    %c0_20 = arith.constant 0 : index
    %c0_21 = arith.constant 0 : index
    %17 = vector.load %arg4[%c0_20, %c0_21] : memref<8x1xf32, #tpu.memory_space<vmem>>, vector<8x1xf32>
    %18 = vector.broadcast %17 : vector<8x1xf32> to vector<8x16xf32>
    %19 = arith.mulf %16, %18 : vector<8x16xf32>
    %c0_22 = arith.constant 0 : index
    %c0_23 = arith.constant 0 : index
    %20 = vector.load %arg5[%c0_22, %c0_23] : memref<8x1xf32, #tpu.memory_space<vmem>>, vector<8x1xf32>
    %21 = vector.broadcast %20 : vector<8x1xf32> to vector<8x16xf32>
    %22 = arith.addf %19, %21 : vector<8x16xf32>
    %cst_24 = arith.constant 0.000000e+00 : f32
    %23 = vector.broadcast %cst_24 : f32 to vector<8x16xf32>
    %24 = arith.maximumf %22, %23 : vector<8x16xf32>
    %25 = vector.shape_cast %24 : vector<8x16xf32> to vector<1x8x16xf32>
    %c0_25 = arith.constant 0 : index
    %c0_26 = arith.constant 0 : index
    %c0_27 = arith.constant 0 : index
    %26 = vector.load %arg6[%c0_25, %c0_26, %c0_27] : memref<1x8x16xf32, #tpu.memory_space<vmem>>, vector<1x8x16xf32>
    tpu.vector_store %arg6[%c0_25, %c0_26, %c0_27], %25 {strides = array<i32>} : memref<1x8x16xf32, #tpu.memory_space<vmem>>, vector<1x8x16xf32>,
    return
  }
  func.func @transform_0(%arg0: i32, %arg1: i32) -> (i32, i32, i32, i32) {
    %c0_i32 = arith.constant 0 : i32
    %c0_i32_0 = arith.constant 0 : i32
    %c0_i32_1 = arith.constant 0 : i32
    return %arg0, %arg1, %c0_i32, %c0_i32_0 : i32, i32, i32, i32
  }
  func.func @transform_1(%arg0: i32, %arg1: i32) -> (i32, i32, i32) {
    %c0_i32 = arith.constant 0 : i32
    %c0_i32_0 = arith.constant 0 : i32
    %c0_i32_1 = arith.constant 0 : i32
    %c0_i32_2 = arith.constant 0 : i32
    return %c0_i32, %c0_i32_0, %c0_i32_1 : i32, i32, i32
  }
  func.func @transform_2(%arg0: i32, %arg1: i32) -> (i32, i32) {
    %c0_i32 = arith.constant 0 : i32
    %c0_i32_0 = arith.constant 0 : i32
    %c0_i32_1 = arith.constant 0 : i32
    return %c0_i32, %c0_i32_0 : i32, i32
  }
  func.func @transform_3(%arg0: i32, %arg1: i32) -> (i32, i32) {
    %c0_i32 = arith.constant 0 : i32
    %c0_i32_0 = arith.constant 0 : i32
    %c0_i32_1 = arith.constant 0 : i32
    return %c0_i32, %c0_i32_0 : i32, i32
  }
  func.func @transform_4(%arg0: i32, %arg1: i32) -> (i32, i32, i32) {
    %c0_i32 = arith.constant 0 : i32
    %c0_i32_0 = arith.constant 0 : i32
    return %arg0, %c0_i32, %arg1 : i32, i32, i32
  }
}

module attributes {stable_mosaic.version = 11 : i64} {
  func.func @conv_stats_kernel(%arg0: i32, %arg1: i32, %arg2: memref<1x1x4x18xbf16, #tpu.memory_space<vmem>>, %arg3: memref<3x8x4xbf16, #tpu.memory_space<vmem>>, %arg4: memref<1x8x1xf32, #tpu.memory_space<vmem>>, %arg5: memref<1x8x1xf32, #tpu.memory_space<vmem>>) attributes {dimension_semantics = [#tpu.dimension_semantics<parallel>, #tpu.dimension_semantics<arbitrary>], iteration_bounds = array<i64: 2, 1>, scalar_prefetch = 0 : i64, scratch_operands = 0 : i64, tpu.core_type = #tpu.core_type<tc>, window_params = [{transform_indices = @transform_0, window_bounds = array<i64: 1, 1, 4, 18>}, {pipeline_mode = #tpu.pipeline_mode<synchronous>, transform_indices = @transform_1, window_bounds = array<i64: 3, 8, 4>}, {transform_indices = @transform_2, window_bounds = array<i64: 1, 8, 1>}, {transform_indices = @transform_3, window_bounds = array<i64: 1, 8, 1>}]} {
    %c0 = arith.constant 0 : index
    %c0_0 = arith.constant 0 : index
    %c0_1 = arith.constant 0 : index
    %c0_2 = arith.constant 0 : index
    %0 = vector.load %arg2[%c0, %c0_0, %c0_1, %c0_2] : memref<1x1x4x18xbf16, #tpu.memory_space<vmem>>, vector<1x1x4x16xbf16>
    %1 = vector.shape_cast %0 : vector<1x1x4x16xbf16> to vector<4x16xbf16>
    %c0_3 = arith.constant 0 : index
    %c0_4 = arith.constant 0 : index
    %c0_5 = arith.constant 0 : index
    %2 = vector.load %arg3[%c0_3, %c0_4, %c0_5] : memref<3x8x4xbf16, #tpu.memory_space<vmem>>, vector<1x8x4xbf16>
    %3 = vector.shape_cast %2 : vector<1x8x4xbf16> to vector<8x4xbf16>
    %cst = arith.constant dense<0.000000e+00> : vector<8x16xf32>
    %4 = tpu.matmul %3, %1, %cst {dimension_numbers = #tpu.dot_dimension_numbers<[1], [0], [0], [1], [0, 0, 1, 1], [], []>} : vector<8x4xbf16>, vector<4x16xbf16>, vector<8x16xf32> -> vector<8x16xf32>
    %c0_6 = arith.constant 0 : index
    %c0_7 = arith.constant 0 : index
    %c0_8 = arith.constant 0 : index
    %c1 = arith.constant 1 : index
    %5 = vector.load %arg2[%c0_6, %c0_7, %c0_8, %c1] : memref<1x1x4x18xbf16, #tpu.memory_space<vmem>>, vector<1x1x4x16xbf16>
    %6 = vector.shape_cast %5 : vector<1x1x4x16xbf16> to vector<4x16xbf16>
    %c1_9 = arith.constant 1 : index
    %c0_10 = arith.constant 0 : index
    %c0_11 = arith.constant 0 : index
    %7 = vector.load %arg3[%c1_9, %c0_10, %c0_11] : memref<3x8x4xbf16, #tpu.memory_space<vmem>>, vector<1x8x4xbf16>
    %8 = vector.shape_cast %7 : vector<1x8x4xbf16> to vector<8x4xbf16>
    %cst_12 = arith.constant dense<0.000000e+00> : vector<8x16xf32>
    %9 = tpu.matmul %8, %6, %cst_12 {dimension_numbers = #tpu.dot_dimension_numbers<[1], [0], [0], [1], [0, 0, 1, 1], [], []>} : vector<8x4xbf16>, vector<4x16xbf16>, vector<8x16xf32> -> vector<8x16xf32>
    %10 = arith.addf %4, %9 : vector<8x16xf32>
    %c0_13 = arith.constant 0 : index
    %c0_14 = arith.constant 0 : index
    %c0_15 = arith.constant 0 : index
    %c2 = arith.constant 2 : index
    %11 = vector.load %arg2[%c0_13, %c0_14, %c0_15, %c2] : memref<1x1x4x18xbf16, #tpu.memory_space<vmem>>, vector<1x1x4x16xbf16>
    %12 = vector.shape_cast %11 : vector<1x1x4x16xbf16> to vector<4x16xbf16>
    %c2_16 = arith.constant 2 : index
    %c0_17 = arith.constant 0 : index
    %c0_18 = arith.constant 0 : index
    %13 = vector.load %arg3[%c2_16, %c0_17, %c0_18] : memref<3x8x4xbf16, #tpu.memory_space<vmem>>, vector<1x8x4xbf16>
    %14 = vector.shape_cast %13 : vector<1x8x4xbf16> to vector<8x4xbf16>
    %cst_19 = arith.constant dense<0.000000e+00> : vector<8x16xf32>
    %15 = tpu.matmul %14, %12, %cst_19 {dimension_numbers = #tpu.dot_dimension_numbers<[1], [0], [0], [1], [0, 0, 1, 1], [], []>} : vector<8x4xbf16>, vector<4x16xbf16>, vector<8x16xf32> -> vector<8x16xf32>
    %16 = arith.addf %10, %15 : vector<8x16xf32>
    %c0_i32 = arith.constant 0 : i32
    %17 = arith.cmpi eq, %arg1, %c0_i32 : i32
    %18 = arith.extui %17 : i1 to i32
    %c0_i32_20 = arith.constant 0 : i32
    %19 = arith.cmpi ne, %18, %c0_i32_20 : i32
    scf.if %19 {
      %cst_35 = arith.constant 0.000000e+00 : f32
      %33 = vector.broadcast %cst_35 : f32 to vector<1x8x1xf32>
      %c0_36 = arith.constant 0 : index
      %c0_37 = arith.constant 0 : index
      %c0_38 = arith.constant 0 : index
      %34 = vector.load %arg4[%c0_36, %c0_37, %c0_38] : memref<1x8x1xf32, #tpu.memory_space<vmem>>, vector<1x8x1xf32>
      tpu.vector_store %arg4[%c0_36, %c0_37, %c0_38], %33 {strides = array<i32>} : memref<1x8x1xf32, #tpu.memory_space<vmem>>, vector<1x8x1xf32>,
      %cst_39 = arith.constant 0.000000e+00 : f32
      %35 = vector.broadcast %cst_39 : f32 to vector<1x8x1xf32>
      %c0_40 = arith.constant 0 : index
      %c0_41 = arith.constant 0 : index
      %c0_42 = arith.constant 0 : index
      %36 = vector.load %arg5[%c0_40, %c0_41, %c0_42] : memref<1x8x1xf32, #tpu.memory_space<vmem>>, vector<1x8x1xf32>
      tpu.vector_store %arg5[%c0_40, %c0_41, %c0_42], %35 {strides = array<i32>} : memref<1x8x1xf32, #tpu.memory_space<vmem>>, vector<1x8x1xf32>,
    } else {
    }
    %c0_21 = arith.constant 0 : index
    %c0_22 = arith.constant 0 : index
    %c0_23 = arith.constant 0 : index
    %20 = vector.load %arg4[%c0_21, %c0_22, %c0_23] : memref<1x8x1xf32, #tpu.memory_space<vmem>>, vector<1x8x1xf32>
    %cst_24 = arith.constant dense<0.000000e+00> : vector<8xf32>
    %21 = vector.multi_reduction <add>, %16, %cst_24 [1] : vector<8x16xf32> to vector<8xf32>
    %22 = vector.shape_cast %21 : vector<8xf32> to vector<8x1xf32>
    %23 = vector.shape_cast %22 : vector<8x1xf32> to vector<1x8x1xf32>
    %24 = arith.addf %20, %23 : vector<1x8x1xf32>
    %c0_25 = arith.constant 0 : index
    %c0_26 = arith.constant 0 : index
    %c0_27 = arith.constant 0 : index
    %25 = vector.load %arg4[%c0_25, %c0_26, %c0_27] : memref<1x8x1xf32, #tpu.memory_space<vmem>>, vector<1x8x1xf32>
    tpu.vector_store %arg4[%c0_25, %c0_26, %c0_27], %24 {strides = array<i32>} : memref<1x8x1xf32, #tpu.memory_space<vmem>>, vector<1x8x1xf32>,
    %c0_28 = arith.constant 0 : index
    %c0_29 = arith.constant 0 : index
    %c0_30 = arith.constant 0 : index
    %26 = vector.load %arg5[%c0_28, %c0_29, %c0_30] : memref<1x8x1xf32, #tpu.memory_space<vmem>>, vector<1x8x1xf32>
    %27 = arith.mulf %16, %16 : vector<8x16xf32>
    %cst_31 = arith.constant dense<0.000000e+00> : vector<8xf32>
    %28 = vector.multi_reduction <add>, %27, %cst_31 [1] : vector<8x16xf32> to vector<8xf32>
    %29 = vector.shape_cast %28 : vector<8xf32> to vector<8x1xf32>
    %30 = vector.shape_cast %29 : vector<8x1xf32> to vector<1x8x1xf32>
    %31 = arith.addf %26, %30 : vector<1x8x1xf32>
    %c0_32 = arith.constant 0 : index
    %c0_33 = arith.constant 0 : index
    %c0_34 = arith.constant 0 : index
    %32 = vector.load %arg5[%c0_32, %c0_33, %c0_34] : memref<1x8x1xf32, #tpu.memory_space<vmem>>, vector<1x8x1xf32>
    tpu.vector_store %arg5[%c0_32, %c0_33, %c0_34], %31 {strides = array<i32>} : memref<1x8x1xf32, #tpu.memory_space<vmem>>, vector<1x8x1xf32>,
    return
  }
  func.func @transform_0(%arg0: i32, %arg1: i32) -> (i32, i32, i32, i32) {
    %c0_i32 = arith.constant 0 : i32
    %c0_i32_0 = arith.constant 0 : i32
    %c0_i32_1 = arith.constant 0 : i32
    return %arg0, %arg1, %c0_i32, %c0_i32_0 : i32, i32, i32, i32
  }
  func.func @transform_1(%arg0: i32, %arg1: i32) -> (i32, i32, i32) {
    %c0_i32 = arith.constant 0 : i32
    %c0_i32_0 = arith.constant 0 : i32
    %c0_i32_1 = arith.constant 0 : i32
    %c0_i32_2 = arith.constant 0 : i32
    return %c0_i32, %c0_i32_0, %c0_i32_1 : i32, i32, i32
  }
  func.func @transform_2(%arg0: i32, %arg1: i32) -> (i32, i32, i32) {
    %c0_i32 = arith.constant 0 : i32
    %c0_i32_0 = arith.constant 0 : i32
    %c0_i32_1 = arith.constant 0 : i32
    return %arg0, %c0_i32, %c0_i32_0 : i32, i32, i32
  }
  func.func @transform_3(%arg0: i32, %arg1: i32) -> (i32, i32, i32) {
    %c0_i32 = arith.constant 0 : i32
    %c0_i32_0 = arith.constant 0 : i32
    %c0_i32_1 = arith.constant 0 : i32
    return %arg0, %c0_i32, %c0_i32_0 : i32, i32, i32
  }
}

</mosaic_0001>

<llo_original>
// kernel: conv_bn_relu_1d.2
$region0: #{conv_bn_relu_1d.2}
  #allocation0 [shape = 'u32[]', space=smem, size = 0x4, offset = 0x4, fixed_abs, tag = 'smem constant byte address 0x4 - core index']
  #allocation1 [shape = 'u32[144,128]{1,0:T(1,128)}', space=vmem, size = 0x12000, scoped, tag = 'internal scratch']
  %s0 = inlined_call_operand.vmem [shape: bf16[2,1,4,18], index: 0, kind: input, shape index: {}]
  %s1 = inlined_call_operand.vmem [shape: bf16[3,8,4], index: 1, kind: input, shape index: {}]
  %s2 = inlined_call_operand.vmem [shape: f32[2,8,1], index: 2, kind: output, shape index: {0}]
  %s3 = inlined_call_operand.vmem [shape: f32[2,8,1], index: 3, kind: output, shape index: {1}]
  %4 = xla_tuple %s2, %s3
  %s5 = sld [smem:[#allocation0]]
  $region53: #{conv_bn_relu_1d.2} parent=0
    _
  %s7 = ssub.s32 1, %s5
  %s8 = scalar_select 0, %s7, %s5
  loop: start=0, step=1, limit=4
  $region2: #{conv_bn_relu_1d.2} parent=0 // loop_pre_header
    _
  $region3: #{conv_bn_relu_1d.2} parent=0 // loop_header
    %s10 = sphi 0, %s14
    %p11 = scmp.ge.s32.totalorder %s10, 4
    %s17 = sphi 0, %s29
    %s18 = sphi 0, %s25
    %s19 = sphi 0, %s17
    %s20 = sphi 0, %s18
    %s21 = sphi 0, %s19
    %s22 = sphi 0, %s20
    %s34 = sphi 0, %s36
    %s37 = sphi 0, %s34
    %s38 = sphi 0, %s37
    %s54 = sphi 0, %s38
    %s58 = sphi 0, %s58
    %s60 = sphi 0, %s58
    %s61 = sphi 0, %s60
    %s75 = sphi 0, %s61
    %s81 = sphi 0, %s83
    %s84 = sphi 0, %s81
    %s85 = sphi 0, %s84
    %s101 = sphi 0, %s85
    %s107 = sphi 0, %s109
    %s110 = sphi 0, %s107
    %s111 = sphi 0, %s110
    %s127 = sphi 0, %s111
  $region4: #{conv_bn_relu_1d.2} parent=0 // loop_header_branch
    %13 = sbr.rel (%p11) target = $region8
  $region5: #{conv_bn_relu_1d.2} parent=0 // loop_body
    %s15 = ssub.s32 %s10, 1
    %s16 = ssub.s32 %s10, 2
    %s23 = sadd.s32 1, %s18
    %p24 = scmp.ge.s32.totalorder %s23, 1
    %s25 = scalar_select %p24, 0, %s23
    %s26 = sadd.s32 1, %s17
    %s27 = scalar_select %p24, %s26, %s17
    %p28 = scmp.ge.s32.totalorder %s27, 2
    %s29 = scalar_select %p28, 0, %s27
    %s30 = ssub.s32 %s17, %s29
    %s31 = ssub.s32 %s18, %s25
    %s32 = sor.u32 %s30, %s31
    %p33 = scmp.eq.s32.totalorder %s32, 0
    %s35 = sadd.s32 %s34, 1
    %s36 = scalar_select %p33, %s34, %s35
    %p39 = pneg %p33
    %p40 = scmp.eq.s32.totalorder %s10, 1
    %p41 = por %p39, %p40
    %p42 = scmp.ne.s32.totalorder %s34, %s37
    %p43 = scmp.eq.s32.totalorder %s10, 0
    %p44 = por %p42, %p43
    %p45 = scmp.ne.s32.totalorder %s34, %s37
    %p46 = scmp.eq.s32.totalorder %s15, 1
    %p47 = por %p45, %p46
    %p48 = scmp.ne.s32.totalorder %s37, %s38
    %p49 = scmp.eq.s32.totalorder %s15, 0
    %p50 = por %p48, %p49
    %p51 = scmp.ne.s32.totalorder %s37, %s38
    %p52 = scmp.eq.s32.totalorder %s16, 1
    %p53 = por %p51, %p52
    %p55 = scmp.ne.s32.totalorder %s38, %s54
    %p56 = scmp.eq.s32.totalorder %s16, 0
    %p57 = por %p55, %p56
    %s59 = sadd.s32 %s58, 1
    %p62 = scmp.eq.s32.totalorder %s10, 1
    %p63 = scmp.ne.s32.totalorder %s58, %s60
    %p64 = scmp.eq.s32.totalorder %s10, 0
    %p65 = por %p63, %p64
    %p66 = scmp.ne.s32.totalorder %s58, %s60
    %p67 = scmp.eq.s32.totalorder %s15, 1
    %p68 = por %p66, %p67
    %p69 = scmp.ne.s32.totalorder %s60, %s61
    %p70 = scmp.eq.s32.totalorder %s15, 0
    %p71 = por %p69, %p70
    %p72 = scmp.ne.s32.totalorder %s60, %s61
    %p73 = scmp.eq.s32.totalorder %s16, 1
    %p74 = por %p72, %p73
    %p76 = scmp.ne.s32.totalorder %s61, %s75
    %p77 = scmp.eq.s32.totalorder %s16, 0
    %p78 = por %p76, %p77
    %s79 = ssub.s32 %s17, %s29
    %p80 = scmp.eq.s32.totalorder %s79, 0
    %s82 = sadd.s32 %s81, 1
    %s83 = scalar_select %p80, %s81, %s82
    %p86 = pneg %p80
    %p87 = scmp.eq.s32.totalorder %s10, 1
    %p88 = por %p86, %p87
    %p89 = scmp.ne.s32.totalorder %s81, %s84
    %p90 = scmp.eq.s32.totalorder %s10, 0
    %p91 = por %p89, %p90
    %p92 = scmp.ne.s32.totalorder %s81, %s84
    %p93 = scmp.eq.s32.totalorder %s15, 1
    %p94 = por %p92, %p93
    %p95 = scmp.ne.s32.totalorder %s84, %s85
    %p96 = scmp.eq.s32.totalorder %s15, 0
    %p97 = por %p95, %p96
    %p98 = scmp.ne.s32.totalorder %s84, %s85
    %p99 = scmp.eq.s32.totalorder %s16, 1
    %p100 = por %p98, %p99
    %p102 = scmp.ne.s32.totalorder %s85, %s101
    %p103 = scmp.eq.s32.totalorder %s16, 0
    %p104 = por %p102, %p103
    %s105 = ssub.s32 %s17, %s29
    %p106 = scmp.eq.s32.totalorder %s105, 0
    %s108 = sadd.s32 %s107, 1
    %s109 = scalar_select %p106, %s107, %s108
    %p112 = pneg %p106
    %p113 = scmp.eq.s32.totalorder %s10, 1
    %p114 = por %p112, %p113
    %p115 = scmp.ne.s32.totalorder %s107, %s110
    %p116 = scmp.eq.s32.totalorder %s10, 0
    %p117 = por %p115, %p116
    %p118 = scmp.ne.s32.totalorder %s107, %s110
    %p119 = scmp.eq.s32.totalorder %s15, 1
    %p120 = por %p118, %p119
    %p121 = scmp.ne.s32.totalorder %s110, %s111
    %p122 = scmp.eq.s32.totalorder %s15, 0
    %p123 = por %p121, %p122
    %p124 = scmp.ne.s32.totalorder %s110, %s111
    %p125 = scmp.eq.s32.totalorder %s16, 1
    %p126 = por %p124, %p125
    %p128 = scmp.ne.s32.totalorder %s111, %s127
    %p129 = scmp.eq.s32.totalorder %s16, 0
    %p130 = por %p128, %p129
    %p131 = scmp.le.s32.totalorder 1, %s10
    %p132 = scmp.lt.s32.totalorder %s10, 3
    %p133 = pnand %p131, %p132
    %p134 = pneg %p133
    // Predicated region
    $region9: #{conv_bn_relu_1d.2} parent=5 // pred_check
      _
    $region10: #{conv_bn_relu_1d.2} parent=5 // pred_check_branch
      %136 = sbr.rel (%p133) target = $region12
    $region11: #{conv_bn_relu_1d.2} parent=5 // pred_region
      %s137 = ssub.s32 %s10, 1
      // Predicated region
      $region13: #{conv_bn_relu_1d.2} parent=11 // pred_check
        %p138 = pneg %p71
      $region14: #{conv_bn_relu_1d.2} parent=11 // pred_check_branch
        %140 = sbr.rel (%p138) target = $region16
      $region15: #{conv_bn_relu_1d.2} parent=11 // pred_region
        _
      $region16: #{conv_bn_relu_1d.2} parent=11 // pred_fallthru
        _
    $region12: #{conv_bn_relu_1d.2} parent=5 // pred_fallthru
      _
    %p141 = scmp.lt.s32.totalorder %s10, 2
    // Predicated region
    $region17: #{conv_bn_relu_1d.2} parent=5 // pred_check
      %p142 = pneg %p141
    $region18: #{conv_bn_relu_1d.2} parent=5 // pred_check_branch
      %144 = sbr.rel (%p142) target = $region20
    $region19: #{conv_bn_relu_1d.2} parent=5 // pred_region
      // Predicated region
      $region21: #{conv_bn_relu_1d.2} parent=19 // pred_check
        %p145 = pneg %p44
      $region22: #{conv_bn_relu_1d.2} parent=19 // pred_check_branch
        %147 = sbr.rel (%p145) target = $region24
      $region23: #{conv_bn_relu_1d.2} parent=19 // pred_region
        %p148 = scmp.lt.s32.totalorder %s17, 1
        %s149 = scalar_select %p148, %s17, 1
        %p150 = scmp.lt.s32.totalorder %s18, 0
        %s151 = scalar_select %p150, %s18, 0
        %s152 = sadd.s32 %s151, %s149
        %s153 = smul.addr %s152, 2
        %s154 = scalar_lea.vmem %s0, %s153
      $region24: #{conv_bn_relu_1d.2} parent=19 // pred_fallthru
        _
    $region20: #{conv_bn_relu_1d.2} parent=5 // pred_fallthru
      _
    %p155 = scmp.le.s32.totalorder 1, %s10
    %p156 = scmp.lt.s32.totalorder %s10, 3
    %p157 = pnand %p155, %p156
    %p158 = pneg %p157
    // Predicated region
    $region25: #{conv_bn_relu_1d.2} parent=5 // pred_check
      _
    $region26: #{conv_bn_relu_1d.2} parent=5 // pred_check_branch
      %160 = sbr.rel (%p157) target = $region28
    $region27: #{conv_bn_relu_1d.2} parent=5 // pred_region
      %s161 = ssub.s32 %s10, 1
      %p162 = scmp.lt.s32.totalorder %s19, 1
      %s163 = scalar_select %p162, %s19, 1
      %p164 = scmp.lt.s32.totalorder %s20, 0
      %s165 = scalar_select %p164, %s20, 0
      %s166 = sadd.s32 %s165, %s163
      %s167 = smul.addr %s166, 2
      %s168 = scalar_lea.vmem %s0, %s167
      %p169 = pneg %p50
      %p170 = pneg %p47
      %p171 = pneg %p71
      %p172 = pneg %p68
      %p173 = pneg %p97
      %p174 = pneg %p94
      %p175 = scmp.lt.s32.totalorder %s19, 1
      %s176 = scalar_select %p175, %s19, 1
      %s177 = smul.addr %s176, 8
      %s178 = scalar_lea.vmem %s2, %s177
      %p179 = pneg %p123
      %p180 = pneg %p120
      %p181 = scmp.lt.s32.totalorder %s19, 1
      %s182 = scalar_select %p181, %s19, 1
      %s183 = smul.addr %s182, 8
      %s184 = scalar_lea.vmem %s3, %s183
      %p185 = scmp.lt.s32.totalorder %s19, 1
      %s186 = scalar_select %p185, %s19, 1
      %p187 = scmp.lt.s32.totalorder %s20, 0
      %s188 = scalar_select %p187, %s20, 0
      %s189 = sadd.s32 %s188, %s186
      %s190 = smul.addr %s189, 2
      %s191 = scalar_lea.vmem %s0, %s190
      %p192 = scmp.lt.s32.totalorder %s19, 1
      %s193 = scalar_select %p192, %s19, 1
      %s194 = smul.addr %s193, 8
      %s195 = scalar_lea.vmem %s2, %s194
      %p196 = scmp.lt.s32.totalorder %s19, 1
      %s197 = scalar_select %p196, %s19, 1
      %s198 = smul.addr %s197, 8
      %s199 = scalar_lea.vmem %s3, %s198
      %v201 = vld [vmem:[%s191] sm:$0x3]
      %v202 = vld [vmem:[%s1] sm:$0xf]
      %s203 = scalar_lea.vmem %s1, 4
      %v204 = vld [vmem:[%s203] sm:$0xf]
      %v207 = vunpack.c.l.s4 1983009808
      %v208 = vunpack.c.0.s8 %v207
      %v209 = vlaneseq
      %v210 = vshrl.u32 %v209, 7
      %v211 = vsub.s32 %v208, %v210
      %v212 = vrot.slane %v201, %v211
      %213 = vrot.lane.b32.xlu0 %v212, 127
      %v214 = vpop.permute.xlu0 %213
      %vm215 = vcmask 31744
      %v217 = vsel %vm215, %v204, 0
      %vm219 = vcmask 1041408
      %v221 = vsel %vm219, %v214, 0
      %223 = vmatprep.subr.bf16.mxu0 0
      %224 = vmatpush1.bf16.msra.mxu0 0
      %225 = vmatprep.subr.bf16.mxu0 0
      %226 = vmatpush1.bf16.msra.mxu0 0
      %227 = vmatprep.subr.bf16.mxu0 0
      %228 = vmatpush1.bf16.msra.mxu0 0
      %229 = vmatprep.subr.bf16.mxu0 0
      %230 = vmatpush1.bf16.msra.mxu0 0
      %231 = vmatprep.subr.bf16.mxu0 0
      %232 = vmatpush1.bf16.msra.mxu0 0
      %233 = vmatprep.subr.bf16.mxu0 0
      %234 = vmatpush1.bf16.msra.mxu0 0
      %235 = vmatprep.subr.bf16.mxu0 0
      %236 = vmatpush1.bf16.msra.mxu0 0
      %237 = vmatprep.subr.bf16.mxu0 0
      %238 = vmatpush1.bf16.msra.mxu0 %v221
      %239 = vmatprep.subr.bf16.mxu0 0
      %240 = vmatpush2.bf16.msra.mxu0 0
      %241 = vmatprep.subr.bf16.mxu0 0
      %242 = vmatpush2.bf16.msra.mxu0 0
      %243 = vmatprep.subr.bf16.mxu0 0
      %244 = vmatpush2.bf16.msra.mxu0 0
      %245 = vmatprep.subr.bf16.mxu0 0
      %246 = vmatpush2.bf16.msra.mxu0 0
      %247 = vmatprep.subr.bf16.mxu0 0
      %248 = vmatpush2.bf16.msra.mxu0 0
      %249 = vmatprep.subr.bf16.mxu0 0
      %250 = vmatpush2.bf16.msra.mxu0 0
      %251 = vmatprep.subr.bf16.mxu0 0
      %252 = vmatpush2.bf16.msra.mxu0 0
      %253 = vmatprep.subr.bf16.mxu0 0
      %254 = vmatpush2.bf16.msra.mxu0 0
      %255 = vmatprep.mubr.bf16.mxu0 0
      %256 = vmatmul.mubr.bf16.gmra.mxu0 %v217
      %v257 = vpop.f32.mrf.mxu0
      %v258 = vadd.f32 0.0, %v257
      %v259 = vpop.f32.mrf.mxu0
      %v260 = vpop.f32.mrf.mxu0
      %v261 = vpop.f32.mrf.mxu0
      %262 = vdwg.mxu0
      %v264 = vsel %vm215, %v202, 0
      %v267 = vsel %vm219, %v201, 0
      %269 = vmatprep.subr.bf16.mxu0 0
      %270 = vmatpush1.bf16.msra.mxu0 0
      %271 = vmatprep.subr.bf16.mxu0 0
      %272 = vmatpush1.bf16.msra.mxu0 0
      %273 = vmatprep.subr.bf16.mxu0 0
      %274 = vmatpush1.bf16.msra.mxu0 0
      %275 = vmatprep.subr.bf16.mxu0 0
      %276 = vmatpush1.bf16.msra.mxu0 0
      %277 = vmatprep.subr.bf16.mxu0 0
      %278 = vmatpush1.bf16.msra.mxu0 0
      %279 = vmatprep.subr.bf16.mxu0 0
      %280 = vmatpush1.bf16.msra.mxu0 0
      %281 = vmatprep.subr.bf16.mxu0 0
      %282 = vmatpush1.bf16.msra.mxu0 0
      %283 = vmatprep.subr.bf16.mxu0 0
      %284 = vmatpush1.bf16.msra.mxu0 %v267
      %285 = vmatprep.subr.bf16.mxu0 0
      %286 = vmatpush2.bf16.msra.mxu0 0
      %287 = vmatprep.subr.bf16.mxu0 0
      %288 = vmatpush2.bf16.msra.mxu0 0
      %289 = vmatprep.subr.bf16.mxu0 0
      %290 = vmatpush2.bf16.msra.mxu0 0
      %291 = vmatprep.subr.bf16.mxu0 0
      %292 = vmatpush2.bf16.msra.mxu0 0
      %293 = vmatprep.subr.bf16.mxu0 0
      %294 = vmatpush2.bf16.msra.mxu0 0
      %295 = vmatprep.subr.bf16.mxu0 0
      %296 = vmatpush2.bf16.msra.mxu0 0
      %297 = vmatprep.subr.bf16.mxu0 0
      %298 = vmatpush2.bf16.msra.mxu0 0
      %299 = vmatprep.subr.bf16.mxu0 0
      %300 = vmatpush2.bf16.msra.mxu0 0
      %301 = vmatprep.mubr.bf16.mxu0 0
      %302 = vmatmul.mubr.bf16.gmra.mxu0 %v264
      %v303 = vpop.f32.mrf.mxu0
      %v304 = vadd.f32 %v258, %v303
      %v305 = vpop.f32.mrf.mxu0
      %v306 = vpop.f32.mrf.mxu0
      %v307 = vpop.f32.mrf.mxu0
      %308 = vdwg.mxu0
      %v309 = vld [vmem:[%s191] sm:$0x3]
      %s310 = scalar_lea.vmem %s1, 8
      %v311 = vld [vmem:[%s310] sm:$0xf]
      %v314 = vunpack.c.l.s4 1983009808
      %v315 = vunpack.c.0.s8 %v314
      %v316 = vlaneseq
      %v317 = vshrl.u32 %v316, 7
      %v318 = vsub.s32 %v315, %v317
      %v319 = vrot.slane %v309, %v318
      %320 = vrot.lane.b32.xlu0 %v319, 126
      %v321 = vpop.permute.xlu0 %320
      %v323 = vsel %vm215, %v311, 0
      %v326 = vsel %vm219, %v321, 0
      %328 = vmatprep.subr.bf16.mxu0 0
      %329 = vmatpush1.bf16.msra.mxu0 0
      %330 = vmatprep.subr.bf16.mxu0 0
      %331 = vmatpush1.bf16.msra.mxu0 0
      %332 = vmatprep.subr.bf16.mxu0 0
      %333 = vmatpush1.bf16.msra.mxu0 0
      %334 = vmatprep.subr.bf16.mxu0 0
      %335 = vmatpush1.bf16.msra.mxu0 0
      %336 = vmatprep.subr.bf16.mxu0 0
      %337 = vmatpush1.bf16.msra.mxu0 0
      %338 = vmatprep.subr.bf16.mxu0 0
      %339 = vmatpush1.bf16.msra.mxu0 0
      %340 = vmatprep.subr.bf16.mxu0 0
      %341 = vmatpush1.bf16.msra.mxu0 0
      %342 = vmatprep.subr.bf16.mxu0 0
      %343 = vmatpush1.bf16.msra.mxu0 %v326
      %344 = vmatprep.subr.bf16.mxu0 0
      %345 = vmatpush2.bf16.msra.mxu0 0
      %346 = vmatprep.subr.bf16.mxu0 0
      %347 = vmatpush2.bf16.msra.mxu0 0
      %348 = vmatprep.subr.bf16.mxu0 0
      %349 = vmatpush2.bf16.msra.mxu0 0
      %350 = vmatprep.subr.bf16.mxu0 0
      %351 = vmatpush2.bf16.msra.mxu0 0
      %352 = vmatprep.subr.bf16.mxu0 0
      %353 = vmatpush2.bf16.msra.mxu0 0
      %354 = vmatprep.subr.bf16.mxu0 0
      %355 = vmatpush2.bf16.msra.mxu0 0
      %356 = vmatprep.subr.bf16.mxu0 0
      %357 = vmatpush2.bf16.msra.mxu0 0
      %358 = vmatprep.subr.bf16.mxu0 0
      %359 = vmatpush2.bf16.msra.mxu0 0
      %360 = vmatprep.mubr.bf16.mxu0 0
      %361 = vmatmul.mubr.bf16.gmra.mxu0 %v323
      %v362 = vpop.f32.mrf.mxu0
      %v363 = vadd.f32 0.0, %v362
      %v364 = vpop.f32.mrf.mxu0
      %v365 = vpop.f32.mrf.mxu0
      %v366 = vpop.f32.mrf.mxu0
      %367 = vdwg.mxu0
      %v368 = vadd.f32 %v304, %v363
      %p369 = scmp.eq.s32.totalorder %s20, 0
      // Predicated region
      $region29: #{conv_bn_relu_1d.2} parent=27 // pred_check
        %p370 = pneg %p369
      $region30: #{conv_bn_relu_1d.2} parent=27 // pred_check_branch
        %372 = sbr.rel (%p370) target = $region32
      $region31: #{conv_bn_relu_1d.2} parent=27 // pred_region
        %vm373 = vcmask 7168
        %374 = vst.msk [vmem:[%s195] sm:$0xff] %vm373, 0.0
        %375 = vst.msk [vmem:[%s199] sm:$0xff] %vm373, 0.0
      $region32: #{conv_bn_relu_1d.2} parent=27 // pred_fallthru
        _
      %v376 = vld [vmem:[%s195] sm:$0xff]
      %vm377 = vcmask 130048
      %v378 = vsel %vm377, %v368, 0.0
      %379 = vadd.xlane.f32.xlu0 %v378
      %v380 = vpop.xlane.xlu0 %379
      %v381 = vadd.f32 %v376, %v380
      %vm382 = vcmask 7168
      %383 = vst.msk [vmem:[%s195] sm:$0xff] %vm382, %v381
      %v384 = vld [vmem:[%s199] sm:$0xff]
      %v385 = vmul.f32 %v368, %v368
      %v386 = vsel %vm377, %v385, 0.0
      %387 = vadd.xlane.f32.xlu0 %v386
      %v388 = vpop.xlane.xlu0 %387
      %v389 = vadd.f32 %v384, %v388
      %390 = vst.msk [vmem:[%s199] sm:$0xff] %vm382, %v389
      %p391 = scmp.lt.s32.totalorder %s19, 1
      %s392 = scalar_select %p391, %s19, 1
      %s393 = smul.addr %s392, 8
      %s394 = scalar_lea.vmem %s2, %s393
      %p395 = scmp.lt.s32.totalorder %s19, 1
      %s396 = scalar_select %p395, %s19, 1
      %s397 = smul.addr %s396, 8
      %s398 = scalar_lea.vmem %s3, %s397
      // Predicated region
      $region33: #{conv_bn_relu_1d.2} parent=27 // pred_check
        %p399 = pneg %p94
      $region34: #{conv_bn_relu_1d.2} parent=27 // pred_check_branch
        %401 = sbr.rel (%p399) target = $region36
      $region35: #{conv_bn_relu_1d.2} parent=27 // pred_region
        _
      $region36: #{conv_bn_relu_1d.2} parent=27 // pred_fallthru
        _
      // Predicated region
      $region37: #{conv_bn_relu_1d.2} parent=27 // pred_check
        %p402 = pneg %p120
      $region38: #{conv_bn_relu_1d.2} parent=27 // pred_check_branch
        %404 = sbr.rel (%p402) target = $region40
      $region39: #{conv_bn_relu_1d.2} parent=27 // pred_region
        _
      $region40: #{conv_bn_relu_1d.2} parent=27 // pred_fallthru
        _
    $region28: #{conv_bn_relu_1d.2} parent=5 // pred_fallthru
      _
    %p405 = scmp.le.s32.totalorder 2, %s10
    // Predicated region
    $region41: #{conv_bn_relu_1d.2} parent=5 // pred_check
      %p406 = pneg %p405
    $region42: #{conv_bn_relu_1d.2} parent=5 // pred_check_branch
      %408 = sbr.rel (%p406) target = $region44
    $region43: #{conv_bn_relu_1d.2} parent=5 // pred_region
      %s409 = ssub.s32 %s10, 2
      // Predicated region
      $region45: #{conv_bn_relu_1d.2} parent=43 // pred_check
        %p410 = pneg %p100
      $region46: #{conv_bn_relu_1d.2} parent=43 // pred_check_branch
        %412 = sbr.rel (%p410) target = $region48
      $region47: #{conv_bn_relu_1d.2} parent=43 // pred_region
        %p413 = scmp.lt.s32.totalorder %s21, 1
        %s414 = scalar_select %p413, %s21, 1
        %s415 = smul.addr %s414, 8
        %s416 = scalar_lea.vmem %s2, %s415
      $region48: #{conv_bn_relu_1d.2} parent=43 // pred_fallthru
        _
      // Predicated region
      $region49: #{conv_bn_relu_1d.2} parent=43 // pred_check
        %p417 = pneg %p126
      $region50: #{conv_bn_relu_1d.2} parent=43 // pred_check_branch
        %419 = sbr.rel (%p417) target = $region52
      $region51: #{conv_bn_relu_1d.2} parent=43 // pred_region
        %p420 = scmp.lt.s32.totalorder %s21, 1
        %s421 = scalar_select %p420, %s21, 1
        %s422 = smul.addr %s421, 8
        %s423 = scalar_lea.vmem %s3, %s422
      $region52: #{conv_bn_relu_1d.2} parent=43 // pred_fallthru
        _
    $region44: #{conv_bn_relu_1d.2} parent=5 // pred_fallthru
      _
  $region6: #{conv_bn_relu_1d.2} parent=0 // loop_footer
    %s14 = sadd.s32 1, %s10
  $region7: #{conv_bn_relu_1d.2} parent=0 // loop_footer_branch
    %9 = sbr.rel target = $region3
  $region8: #{conv_bn_relu_1d.2} parent=0 // loop_exit
    _

// kernel: conv_bn_relu_1d.3
$region0: #{conv_bn_relu_1d.3}
  #allocation0 [shape = 'u32[]', space=smem, size = 0x4, offset = 0x4, fixed_abs, tag = 'smem constant byte address 0x4 - core index']
  #allocation1 [shape = 'u32[144,128]{1,0:T(1,128)}', space=vmem, size = 0x12000, scoped, tag = 'internal scratch']
  %s0 = inlined_call_operand.vmem [shape: bf16[2,1,4,18], index: 0, kind: input, shape index: {}]
  %s1 = inlined_call_operand.vmem [shape: bf16[3,8,4], index: 1, kind: input, shape index: {}]
  %s2 = inlined_call_operand.vmem [shape: f32[8,1], index: 2, kind: input, shape index: {}]
  %s3 = inlined_call_operand.vmem [shape: f32[8,1], index: 3, kind: input, shape index: {}]
  %s4 = inlined_call_operand.hbm [shape: f32[2,8,16], index: 4, kind: output, shape index: {}]
  %s5 = sld [smem:[#allocation0]]
  $region49: #{conv_bn_relu_1d.3} parent=0
    _
  %s7 = ssub.s32 1, %s5
  %s8 = scalar_select 0, %s7, %s5
  $region1: #{conv_bn_relu_1d.3} parent=0
    #allocation2 [shape = 'u8[8192]{0}', space=vmem, size = 0x2000, scoped, tag = 'output window, operand 0']
    #allocation3 [shape = 's32[2]{0}', space=sflag, size = 0x8, scoped, tag = 'scoped memory for conv_bn_relu_1d.3']
    %9 = vsyncpa [#allocation3], 0
    %s10 = scalar_lea.sflag [#allocation3], 1
    %11 = vsyncpa %s10, 0
    loop: start=0, step=1, limit=4
    $region2: #{conv_bn_relu_1d.3} parent=1 // loop_pre_header
      _
    $region3: #{conv_bn_relu_1d.3} parent=1 // loop_header
      %s13 = sphi 0, %s17
      %p14 = scmp.ge.s32.totalorder %s13, 4
      %s20 = sphi 0, %s32
      %s21 = sphi 0, %s28
      %s22 = sphi 0, %s20
      %s23 = sphi 0, %s21
      %s24 = sphi 0, %s22
      %s25 = sphi 0, %s23
      %s37 = sphi 0, %s39
      %s40 = sphi 0, %s37
      %s41 = sphi 0, %s40
      %s57 = sphi 0, %s41
      %s61 = sphi 0, %s61
      %s63 = sphi 0, %s61
      %s64 = sphi 0, %s63
      %s78 = sphi 0, %s64
      %s82 = sphi 0, %s82
      %s84 = sphi 0, %s82
      %s85 = sphi 0, %s84
      %s99 = sphi 0, %s85
      %s103 = sphi 0, %s103
      %s105 = sphi 0, %s103
      %s106 = sphi 0, %s105
      %s120 = sphi 0, %s106
      %s128 = sphi 0, %s130
      %s131 = sphi 0, %s128
      %s132 = sphi 0, %s131
      %s148 = sphi 0, %s132
    $region4: #{conv_bn_relu_1d.3} parent=1 // loop_header_branch
      %16 = sbr.rel (%p14) target = $region8
    $region5: #{conv_bn_relu_1d.3} parent=1 // loop_body
      %s18 = ssub.s32 %s13, 1
      %s19 = ssub.s32 %s13, 2
      %s26 = sadd.s32 1, %s21
      %p27 = scmp.ge.s32.totalorder %s26, 1
      %s28 = scalar_select %p27, 0, %s26
      %s29 = sadd.s32 1, %s20
      %s30 = scalar_select %p27, %s29, %s20
      %p31 = scmp.ge.s32.totalorder %s30, 2
      %s32 = scalar_select %p31, 0, %s30
      %s33 = ssub.s32 %s20, %s32
      %s34 = ssub.s32 %s21, %s28
      %s35 = sor.u32 %s33, %s34
      %p36 = scmp.eq.s32.totalorder %s35, 0
      %s38 = sadd.s32 %s37, 1
      %s39 = scalar_select %p36, %s37, %s38
      %p42 = pneg %p36
      %p43 = scmp.eq.s32.totalorder %s13, 1
      %p44 = por %p42, %p43
      %p45 = scmp.ne.s32.totalorder %s37, %s40
      %p46 = scmp.eq.s32.totalorder %s13, 0
      %p47 = por %p45, %p46
      %p48 = scmp.ne.s32.totalorder %s37, %s40
      %p49 = scmp.eq.s32.totalorder %s18, 1
      %p50 = por %p48, %p49
      %p51 = scmp.ne.s32.totalorder %s40, %s41
      %p52 = scmp.eq.s32.totalorder %s18, 0
      %p53 = por %p51, %p52
      %p54 = scmp.ne.s32.totalorder %s40, %s41
      %p55 = scmp.eq.s32.totalorder %s19, 1
      %p56 = por %p54, %p55
      %p58 = scmp.ne.s32.totalorder %s41, %s57
      %p59 = scmp.eq.s32.totalorder %s19, 0
      %p60 = por %p58, %p59
      %s62 = sadd.s32 %s61, 1
      %p65 = scmp.eq.s32.totalorder %s13, 1
      %p66 = scmp.ne.s32.totalorder %s61, %s63
      %p67 = scmp.eq.s32.totalorder %s13, 0
      %p68 = por %p66, %p67
      %p69 = scmp.ne.s32.totalorder %s61, %s63
      %p70 = scmp.eq.s32.totalorder %s18, 1
      %p71 = por %p69, %p70
      %p72 = scmp.ne.s32.totalorder %s63, %s64
      %p73 = scmp.eq.s32.totalorder %s18, 0
      %p74 = por %p72, %p73
      %p75 = scmp.ne.s32.totalorder %s63, %s64
      %p76 = scmp.eq.s32.totalorder %s19, 1
      %p77 = por %p75, %p76
      %p79 = scmp.ne.s32.totalorder %s64, %s78
      %p80 = scmp.eq.s32.totalorder %s19, 0
      %p81 = por %p79, %p80
      %s83 = sadd.s32 %s82, 1
      %p86 = scmp.eq.s32.totalorder %s13, 1
      %p87 = scmp.ne.s32.totalorder %s82, %s84
      %p88 = scmp.eq.s32.totalorder %s13, 0
      %p89 = por %p87, %p88
      %p90 = scmp.ne.s32.totalorder %s82, %s84
      %p91 = scmp.eq.s32.totalorder %s18, 1
      %p92 = por %p90, %p91
      %p93 = scmp.ne.s32.totalorder %s84, %s85
      %p94 = scmp.eq.s32.totalorder %s18, 0
      %p95 = por %p93, %p94
      %p96 = scmp.ne.s32.totalorder %s84, %s85
      %p97 = scmp.eq.s32.totalorder %s19, 1
      %p98 = por %p96, %p97
      %p100 = scmp.ne.s32.totalorder %s85, %s99
      %p101 = scmp.eq.s32.totalorder %s19, 0
      %p102 = por %p100, %p101
      %s104 = sadd.s32 %s103, 1
      %p107 = scmp.eq.s32.totalorder %s13, 1
      %p108 = scmp.ne.s32.totalorder %s103, %s105
      %p109 = scmp.eq.s32.totalorder %s13, 0
      %p110 = por %p108, %p109
      %p111 = scmp.ne.s32.totalorder %s103, %s105
      %p112 = scmp.eq.s32.totalorder %s18, 1
      %p113 = por %p111, %p112
      %p114 = scmp.ne.s32.totalorder %s105, %s106
      %p115 = scmp.eq.s32.totalorder %s18, 0
      %p116 = por %p114, %p115
      %p117 = scmp.ne.s32.totalorder %s105, %s106
      %p118 = scmp.eq.s32.totalorder %s19, 1
      %p119 = por %p117, %p118
      %p121 = scmp.ne.s32.totalorder %s106, %s120
      %p122 = scmp.eq.s32.totalorder %s19, 0
      %p123 = por %p121, %p122
      %s124 = ssub.s32 %s20, %s32
      %s125 = ssub.s32 %s21, %s28
      %s126 = sor.u32 %s124, %s125
      %p127 = scmp.eq.s32.totalorder %s126, 0
      %s129 = sadd.s32 %s128, 1
      %s130 = scalar_select %p127, %s128, %s129
      %p133 = pneg %p127
      %p134 = scmp.eq.s32.totalorder %s13, 1
      %p135 = por %p133, %p134
      %p136 = scmp.ne.s32.totalorder %s128, %s131
      %p137 = scmp.eq.s32.totalorder %s13, 0
      %p138 = por %p136, %p137
      %p139 = scmp.ne.s32.totalorder %s128, %s131
      %p140 = scmp.eq.s32.totalorder %s18, 1
      %p141 = por %p139, %p140
      %p142 = scmp.ne.s32.totalorder %s131, %s132
      %p143 = scmp.eq.s32.totalorder %s18, 0
      %p144 = por %p142, %p143
      %p145 = scmp.ne.s32.totalorder %s131, %s132
      %p146 = scmp.eq.s32.totalorder %s19, 1
      %p147 = por %p145, %p146
      %p149 = scmp.ne.s32.totalorder %s132, %s148
      %p150 = scmp.eq.s32.totalorder %s19, 0
      %p151 = por %p149, %p150
      %p152 = scmp.le.s32.totalorder 1, %s13
      %p153 = scmp.lt.s32.totalorder %s13, 3
      %p154 = pnand %p152, %p153
      %p155 = pneg %p154
      // Predicated region
      $region9: #{conv_bn_relu_1d.3} parent=5 // pred_check
        _
      $region10: #{conv_bn_relu_1d.3} parent=5 // pred_check_branch
        %157 = sbr.rel (%p154) target = $region12
      $region11: #{conv_bn_relu_1d.3} parent=5 // pred_region
        %s158 = ssub.s32 %s13, 1
        // Predicated region
        $region13: #{conv_bn_relu_1d.3} parent=11 // pred_check
          %p159 = pneg %p74
        $region14: #{conv_bn_relu_1d.3} parent=11 // pred_check_branch
          %161 = sbr.rel (%p159) target = $region16
        $region15: #{conv_bn_relu_1d.3} parent=11 // pred_region
          _
        $region16: #{conv_bn_relu_1d.3} parent=11 // pred_fallthru
          _
        // Predicated region
        $region17: #{conv_bn_relu_1d.3} parent=11 // pred_check
          %p162 = pneg %p95
        $region18: #{conv_bn_relu_1d.3} parent=11 // pred_check_branch
          %164 = sbr.rel (%p162) target = $region20
        $region19: #{conv_bn_relu_1d.3} parent=11 // pred_region
          _
        $region20: #{conv_bn_relu_1d.3} parent=11 // pred_fallthru
          _
        // Predicated region
        $region21: #{conv_bn_relu_1d.3} parent=11 // pred_check
          %p165 = pneg %p116
        $region22: #{conv_bn_relu_1d.3} parent=11 // pred_check_branch
          %167 = sbr.rel (%p165) target = $region24
        $region23: #{conv_bn_relu_1d.3} parent=11 // pred_region
          _
        $region24: #{conv_bn_relu_1d.3} parent=11 // pred_fallthru
          _
      $region12: #{conv_bn_relu_1d.3} parent=5 // pred_fallthru
        _
      %p168 = scmp.lt.s32.totalorder %s13, 2
      // Predicated region
      $region25: #{conv_bn_relu_1d.3} parent=5 // pred_check
        %p169 = pneg %p168
      $region26: #{conv_bn_relu_1d.3} parent=5 // pred_check_branch
        %171 = sbr.rel (%p169) target = $region28
      $region27: #{conv_bn_relu_1d.3} parent=5 // pred_region
        // Predicated region
        $region29: #{conv_bn_relu_1d.3} parent=27 // pred_check
          %p172 = pneg %p47
        $region30: #{conv_bn_relu_1d.3} parent=27 // pred_check_branch
          %174 = sbr.rel (%p172) target = $region32
        $region31: #{conv_bn_relu_1d.3} parent=27 // pred_region
          %p175 = scmp.lt.s32.totalorder %s20, 1
          %s176 = scalar_select %p175, %s20, 1
          %p177 = scmp.lt.s32.totalorder %s21, 0
          %s178 = scalar_select %p177, %s21, 0
          %s179 = sadd.s32 %s178, %s176
          %s180 = smul.addr %s179, 2
          %s181 = scalar_lea.vmem %s0, %s180
        $region32: #{conv_bn_relu_1d.3} parent=27 // pred_fallthru
          _
      $region28: #{conv_bn_relu_1d.3} parent=5 // pred_fallthru
        _
      %p182 = scmp.le.s32.totalorder 1, %s13
      %p183 = scmp.lt.s32.totalorder %s13, 3
      %p184 = pnand %p182, %p183
      %p185 = pneg %p184
      // Predicated region
      $region33: #{conv_bn_relu_1d.3} parent=5 // pred_check
        _
      $region34: #{conv_bn_relu_1d.3} parent=5 // pred_check_branch
        %187 = sbr.rel (%p184) target = $region36
      $region35: #{conv_bn_relu_1d.3} parent=5 // pred_region
        %s188 = ssub.s32 %s13, 1
        %p189 = scmp.lt.s32.totalorder %s22, 1
        %s190 = scalar_select %p189, %s22, 1
        %p191 = scmp.lt.s32.totalorder %s23, 0
        %s192 = scalar_select %p191, %s23, 0
        %s193 = sadd.s32 %s192, %s190
        %s194 = smul.addr %s193, 2
        %s195 = scalar_lea.vmem %s0, %s194
        %p196 = pneg %p53
        %p197 = pneg %p50
        %p198 = pneg %p74
        %p199 = pneg %p71
        %p200 = pneg %p95
        %p201 = pneg %p92
        %p202 = pneg %p116
        %p203 = pneg %p113
        %p204 = pneg %p144
        %p205 = pneg %p141
        %s206 = sand.u32 %s131, 1
        %s207 = scalar_lea.sflag [#allocation3], %s206
        %s208 = sand.u32 %s131, 1
        %s209 = smul.addr %s208, 8
        %s210 = scalar_lea.vmem [#allocation2], %s209
        %p211 = scmp.lt.s32.totalorder %s22, 1
        %s212 = scalar_select %p211, %s22, 1
        %p213 = scmp.lt.s32.totalorder %s23, 0
        %s214 = scalar_select %p213, %s23, 0
        %s215 = sadd.s32 %s214, %s212
        %s216 = smul.addr %s215, 2
        %s217 = scalar_lea.vmem %s0, %s216
        %v219 = vld [vmem:[%s217] sm:$0x3]
        %v220 = vld [vmem:[%s1] sm:$0xf]
        %s221 = scalar_lea.vmem %s1, 4
        %v222 = vld [vmem:[%s221] sm:$0xf]
        %v225 = vunpack.c.l.s4 1983009808
        %v226 = vunpack.c.0.s8 %v225
        %v227 = vlaneseq
        %v228 = vshrl.u32 %v227, 7
        %v229 = vsub.s32 %v226, %v228
        %v230 = vrot.slane %v219, %v229
        %231 = vrot.lane.b32.xlu0 %v230, 127
        %v232 = vpop.permute.xlu0 %231
        %vm233 = vcmask 31744
        %v235 = vsel %vm233, %v222, 0
        %vm237 = vcmask 1041408
        %v239 = vsel %vm237, %v232, 0
        %241 = vmatprep.subr.bf16.mxu0 0
        %242 = vmatpush1.bf16.msra.mxu0 0
        %243 = vmatprep.subr.bf16.mxu0 0
        %244 = vmatpush1.bf16.msra.mxu0 0
        %245 = vmatprep.subr.bf16.mxu0 0
        %246 = vmatpush1.bf16.msra.mxu0 0
        %247 = vmatprep.subr.bf16.mxu0 0
        %248 = vmatpush1.bf16.msra.mxu0 0
        %249 = vmatprep.subr.bf16.mxu0 0
        %250 = vmatpush1.bf16.msra.mxu0 0
        %251 = vmatprep.subr.bf16.mxu0 0
        %252 = vmatpush1.bf16.msra.mxu0 0
        %253 = vmatprep.subr.bf16.mxu0 0
        %254 = vmatpush1.bf16.msra.mxu0 0
        %255 = vmatprep.subr.bf16.mxu0 0
        %256 = vmatpush1.bf16.msra.mxu0 %v239
        %257 = vmatprep.subr.bf16.mxu0 0
        %258 = vmatpush2.bf16.msra.mxu0 0
        %259 = vmatprep.subr.bf16.mxu0 0
        %260 = vmatpush2.bf16.msra.mxu0 0
        %261 = vmatprep.subr.bf16.mxu0 0
        %262 = vmatpush2.bf16.msra.mxu0 0
        %263 = vmatprep.subr.bf16.mxu0 0
        %264 = vmatpush2.bf16.msra.mxu0 0
        %265 = vmatprep.subr.bf16.mxu0 0
        %266 = vmatpush2.bf16.msra.mxu0 0
        %267 = vmatprep.subr.bf16.mxu0 0
        %268 = vmatpush2.bf16.msra.mxu0 0
        %269 = vmatprep.subr.bf16.mxu0 0
        %270 = vmatpush2.bf16.msra.mxu0 0
        %271 = vmatprep.subr.bf16.mxu0 0
        %272 = vmatpush2.bf16.msra.mxu0 0
        %273 = vmatprep.mubr.bf16.mxu0 0
        %274 = vmatmul.mubr.bf16.gmra.mxu0 %v235
        %v275 = vpop.f32.mrf.mxu0
        %v276 = vadd.f32 0.0, %v275
        %v277 = vpop.f32.mrf.mxu0
        %v278 = vpop.f32.mrf.mxu0
        %v279 = vpop.f32.mrf.mxu0
        %280 = vdwg.mxu0
        %v282 = vsel %vm233, %v220, 0
        %v285 = vsel %vm237, %v219, 0
        %287 = vmatprep.subr.bf16.mxu0 0
        %288 = vmatpush1.bf16.msra.mxu0 0
        %289 = vmatprep.subr.bf16.mxu0 0
        %290 = vmatpush1.bf16.msra.mxu0 0
        %291 = vmatprep.subr.bf16.mxu0 0
        %292 = vmatpush1.bf16.msra.mxu0 0
        %293 = vmatprep.subr.bf16.mxu0 0
        %294 = vmatpush1.bf16.msra.mxu0 0
        %295 = vmatprep.subr.bf16.mxu0 0
        %296 = vmatpush1.bf16.msra.mxu0 0
        %297 = vmatprep.subr.bf16.mxu0 0
        %298 = vmatpush1.bf16.msra.mxu0 0
        %299 = vmatprep.subr.bf16.mxu0 0
        %300 = vmatpush1.bf16.msra.mxu0 0
        %301 = vmatprep.subr.bf16.mxu0 0
        %302 = vmatpush1.bf16.msra.mxu0 %v285
        %303 = vmatprep.subr.bf16.mxu0 0
        %304 = vmatpush2.bf16.msra.mxu0 0
        %305 = vmatprep.subr.bf16.mxu0 0
        %306 = vmatpush2.bf16.msra.mxu0 0
        %307 = vmatprep.subr.bf16.mxu0 0
        %308 = vmatpush2.bf16.msra.mxu0 0
        %309 = vmatprep.subr.bf16.mxu0 0
        %310 = vmatpush2.bf16.msra.mxu0 0
        %311 = vmatprep.subr.bf16.mxu0 0
        %312 = vmatpush2.bf16.msra.mxu0 0
        %313 = vmatprep.subr.bf16.mxu0 0
        %314 = vmatpush2.bf16.msra.mxu0 0
        %315 = vmatprep.subr.bf16.mxu0 0
        %316 = vmatpush2.bf16.msra.mxu0 0
        %317 = vmatprep.subr.bf16.mxu0 0
        %318 = vmatpush2.bf16.msra.mxu0 0
        %319 = vmatprep.mubr.bf16.mxu0 0
        %320 = vmatmul.mubr.bf16.gmra.mxu0 %v282
        %v321 = vpop.f32.mrf.mxu0
        %v322 = vadd.f32 %v276, %v321
        %v323 = vpop.f32.mrf.mxu0
        %v324 = vpop.f32.mrf.mxu0
        %v325 = vpop.f32.mrf.mxu0
        %326 = vdwg.mxu0
        %v327 = vld [vmem:[%s217] sm:$0x3]
        %s328 = scalar_lea.vmem %s1, 8
        %v329 = vld [vmem:[%s328] sm:$0xf]
        %v332 = vunpack.c.l.s4 1983009808
        %v333 = vunpack.c.0.s8 %v332
        %v334 = vlaneseq
        %v335 = vshrl.u32 %v334, 7
        %v336 = vsub.s32 %v333, %v335
        %v337 = vrot.slane %v327, %v336
        %338 = vrot.lane.b32.xlu0 %v337, 126
        %v339 = vpop.permute.xlu0 %338
        %v341 = vsel %vm233, %v329, 0
        %v344 = vsel %vm237, %v339, 0
        %346 = vmatprep.subr.bf16.mxu0 0
        %347 = vmatpush1.bf16.msra.mxu0 0
        %348 = vmatprep.subr.bf16.mxu0 0
        %349 = vmatpush1.bf16.msra.mxu0 0
        %350 = vmatprep.subr.bf16.mxu0 0
        %351 = vmatpush1.bf16.msra.mxu0 0
        %352 = vmatprep.subr.bf16.mxu0 0
        %353 = vmatpush1.bf16.msra.mxu0 0
        %354 = vmatprep.subr.bf16.mxu0 0
        %355 = vmatpush1.bf16.msra.mxu0 0
        %356 = vmatprep.subr.bf16.mxu0 0
        %357 = vmatpush1.bf16.msra.mxu0 0
        %358 = vmatprep.subr.bf16.mxu0 0
        %359 = vmatpush1.bf16.msra.mxu0 0
        %360 = vmatprep.subr.bf16.mxu0 0
        %361 = vmatpush1.bf16.msra.mxu0 %v344
        %362 = vmatprep.subr.bf16.mxu0 0
        %363 = vmatpush2.bf16.msra.mxu0 0
        %364 = vmatprep.subr.bf16.mxu0 0
        %365 = vmatpush2.bf16.msra.mxu0 0
        %366 = vmatprep.subr.bf16.mxu0 0
        %367 = vmatpush2.bf16.msra.mxu0 0
        %368 = vmatprep.subr.bf16.mxu0 0
        %369 = vmatpush2.bf16.msra.mxu0 0
        %370 = vmatprep.subr.bf16.mxu0 0
        %371 = vmatpush2.bf16.msra.mxu0 0
        %372 = vmatprep.subr.bf16.mxu0 0
        %373 = vmatpush2.bf16.msra.mxu0 0
        %374 = vmatprep.subr.bf16.mxu0 0
        %375 = vmatpush2.bf16.msra.mxu0 0
        %376 = vmatprep.subr.bf16.mxu0 0
        %377 = vmatpush2.bf16.msra.mxu0 0
        %378 = vmatprep.mubr.bf16.mxu0 0
        %379 = vmatmul.mubr.bf16.gmra.mxu0 %v341
        %v380 = vpop.f32.mrf.mxu0
        %v381 = vadd.f32 0.0, %v380
        %v382 = vpop.f32.mrf.mxu0
        %v383 = vpop.f32.mrf.mxu0
        %v384 = vpop.f32.mrf.mxu0
        %385 = vdwg.mxu0
        %v386 = vadd.f32 %v322, %v381
        %v387 = vld [vmem:[%s2] sm:$0xff]
        %389 = vset.pattern.permute.xlu0 0
        %390 = vperm.xlu0 %389, %v387
        %v391 = vpop.permute.xlu0 %390
        %v393 = vmul.f32 %v386, %v391
        %v394 = vld [vmem:[%s3] sm:$0xff]
        %396 = vset.pattern.permute.xlu0 0
        %397 = vperm.xlu0 %396, %v394
        %v398 = vpop.permute.xlu0 %397
        %v400 = vadd.f32 %v393, %v398
        %v401 = vmax.f32 %v400, 0.0
        %vm402 = vcmask 130048
        %403 = vst.msk [vmem:[%s210] sm:$0xff] %vm402, %v401
        %s404 = sand.u32 %s131, 1
        %s405 = scalar_lea.sflag [#allocation3], %s404
        %s406 = sand.u32 %s131, 1
        %s407 = smul.addr %s406, 8
        %s408 = scalar_lea.vmem [#allocation2], %s407
        // Predicated region
        $region37: #{conv_bn_relu_1d.3} parent=35 // pred_check
          %p409 = pneg %p141
        $region38: #{conv_bn_relu_1d.3} parent=35 // pred_check_branch
          %411 = sbr.rel (%p409) target = $region40
        $region39: #{conv_bn_relu_1d.3} parent=35 // pred_region
          %s413 = ssub.s32 128, 128
          %414 = vsyncadd %s405, %s413
          %s415 = sadd.s32 %s23, %s22
          %s416 = smul.addr %s415, 128
          %s417 = scalar_lea.hbm %s4, %s416
          %s419 = sshll.u32 %s408, 4
          %s420 = int_to_ptr.vmem [resolvable:$true] %s419
          %422 = dma.vmem_to_hbm [thread:$0]  %s420, 128, %s417, %s405
        $region40: #{conv_bn_relu_1d.3} parent=35 // pred_fallthru
          _
      $region36: #{conv_bn_relu_1d.3} parent=5 // pred_fallthru
        _
      %p423 = scmp.le.s32.totalorder 2, %s13
      // Predicated region
      $region41: #{conv_bn_relu_1d.3} parent=5 // pred_check
        %p424 = pneg %p423
      $region42: #{conv_bn_relu_1d.3} parent=5 // pred_check_branch
        %426 = sbr.rel (%p424) target = $region44
      $region43: #{conv_bn_relu_1d.3} parent=5 // pred_region
        %s427 = ssub.s32 %s13, 2
        // Predicated region
        $region45: #{conv_bn_relu_1d.3} parent=43 // pred_check
          %p428 = pneg %p147
        $region46: #{conv_bn_relu_1d.3} parent=43 // pred_check_branch
          %430 = sbr.rel (%p428) target = $region48
        $region47: #{conv_bn_relu_1d.3} parent=43 // pred_region
          %s431 = sand.u32 %s132, 1
          %s432 = scalar_lea.sflag [#allocation3], %s431
          %s433 = sand.u32 %s132, 1
          %s434 = smul.addr %s433, 8
          %s435 = scalar_lea.vmem [#allocation2], %s434
          %436 = dma.done %s432, 128
        $region48: #{conv_bn_relu_1d.3} parent=43 // pred_fallthru
          _
      $region44: #{conv_bn_relu_1d.3} parent=5 // pred_fallthru
        _
    $region6: #{conv_bn_relu_1d.3} parent=1 // loop_footer
      %s17 = sadd.s32 1, %s13
    $region7: #{conv_bn_relu_1d.3} parent=1 // loop_footer_branch
      %12 = sbr.rel target = $region3
    $region8: #{conv_bn_relu_1d.3} parent=1 // loop_exit
      _
    %437 = vsyncpa [#allocation3], 1
    %s438 = scalar_lea.sflag [#allocation3], 1
    %439 = vsyncpa %s438, 1

</llo_original>
